<compile_context>
chip_gen: v5e
topology: v5e:2x2
jax: 0.10.0
libtpu: 0.0.40
codegen_flags: <defaults>
</compile_context>

<pallas_src>
import jax
import jax.numpy as jnp
from jax import lax
from jax.experimental import pallas as pl
from jax.experimental.pallas import tpu as pltpu


def _conv3x3_relu_kernel(x_ref, w_ref, b_ref, o_ref):
    """Row-tap accumulated 3x3 conv + bias + ReLU on one frame-aligned row block.

    x_ref: (rows_blk, (W+2)*Cin)   padded frame rows (frame-major, row-minor)
    w_ref: (3, (W+2)*Cin, W*Cout)  per-vertical-tap Toeplitz-expanded weights
    b_ref: (1, W*Cout)             bias tiled over the W output columns
    o_ref: (rows_blk, W*Cout)      row f*(H+2)+h holds conv output row h of
                                   frame f; the last 2 rows per frame are pad.
    """
    rows = o_ref.shape[0]
    n = o_ref.shape[1]
    m = rows - 2  # last 2 rows of a frame-aligned block are per-frame pad rows

    # In-kernel im2col: output row p needs padded input rows p, p+1, p+2, all of
    # which live inside this frame-aligned block for the m valid rows.
    acc = jnp.dot(x_ref[pl.ds(0, m), :], w_ref[0],
                  preferred_element_type=jnp.float32)
    acc = acc + jnp.dot(x_ref[pl.ds(1, m), :], w_ref[1],
                        preferred_element_type=jnp.float32)
    acc = acc + jnp.dot(x_ref[pl.ds(2, m), :], w_ref[2],
                        preferred_element_type=jnp.float32)
    acc = acc + b_ref[...]                                   # lane-dense bias add
    o_ref[pl.ds(0, m), :] = jnp.maximum(acc, 0.0).astype(o_ref.dtype)
    # Deterministic fill for the 2 per-block pad rows (dropped by the wrapper).
    o_ref[pl.ds(m, 2), :] = jnp.zeros((2, n), dtype=o_ref.dtype)


def prepare_timewarp_params(weight, bias, width):
    """Precompute the per-tap Toeplitz weights + tiled bias (cache per weight update).

    weight: [Cout, Cin, 3, 3], bias: [Cout], width: frame width W.
    Returns (w_taps[3, (W+2)*Cin, W*Cout], b_row[1, W*Cout]).
    Built with dense pad / broadcast / reshape ops only -- no device scatter.
    """
    Cout, Cin, KH, KW = weight.shape
    W = width
    Krow = (W + 2) * Cin
    N = W * Cout

    # m[kh, kw*Cin+cin, cout] = weight[cout, cin, kh, kw]
    m = jnp.transpose(weight, (2, 3, 1, 0)).reshape(KH, KW * Cin, Cout)
    # "Staircase" banded construction: identical rows of length Krow+Cin,
    # re-read at stride Krow, give each output column block w a band offset
    # of w*Cin (the wrap always lands in the zero-padded tail for KW=3).
    r = jnp.pad(m, ((0, 0), (0, Krow + Cin - KW * Cin), (0, 0)))        # (KH, Krow+Cin, Cout)
    flat = jnp.broadcast_to(r[:, None], (KH, W, Krow + Cin, Cout))
    flat = flat.reshape(KH, W * (Krow + Cin), Cout)
    band = flat[:, : W * Krow, :].reshape(KH, W, Krow, Cout)            # band[kh,w,k]=m[kh,k-w*Cin]
    w_taps = jnp.transpose(band, (0, 2, 1, 3)).reshape(KH, Krow, N)

    b_row = jnp.tile(bias, W).reshape(1, N)                              # index w*Cout+cout -> bias[cout]
    return w_taps, b_row


def _row_blocking(num_frames, rows_per_frame, target_rows=1024, min_rows_per_core=512):
    """Frame-aligned row blocking (review items 3 & 4).

    * one block when the whole problem is small (no pointless grid steps or
      duplicate weight fetches on single-TC v5e/v6e);
    * ~target_rows frame-aligned tiles at production sizes so BlockSpec
      pipelining overlaps DMA with the matmuls and VMEM stays bounded;
    * split across TensorCores only when every core gets >= min_rows_per_core
      rows of work (v7x megacore; harmless no-op on single-TC chips).
    """
    total_rows = num_frames * rows_per_frame
    if total_rows <= target_rows:
        fpb = num_frames
    else:
        fpb = max(1, target_rows // rows_per_frame)
        # Non-full blocks must respect the sublane (multiple-of-8) constraint.
        while fpb < num_frames and (fpb * rows_per_frame) % 8 != 0:
            fpb += 1
        fpb = min(fpb, num_frames)
    n_blocks = pl.cdiv(num_frames, fpb)

    if n_blocks == 1:
        try:
            num_cores = max(1, int(getattr(jax.devices()[0], "num_cores", 1) or 1))
        except Exception:
            num_cores = 1
        if (num_cores > 1 and num_frames % num_cores == 0
                and (num_frames // num_cores) * rows_per_frame >= min_rows_per_core
                and ((num_frames // num_cores) * rows_per_frame) % 8 == 0):
            fpb = num_frames // num_cores
            n_blocks = num_cores
    return fpb, n_blocks


def time_warp_forward(x, w_taps, b_row):
    """x: [B, T, Cin, H, W]; (w_taps, b_row) from prepare_timewarp_params.

    Returns [B, T, Cout, H, W], matching TimeWarp(model=Conv2d(3x3,pad=1)+ReLU).
    """
    B, T, Cin, H, W = x.shape
    KH, Krow, N = w_taps.shape
    assert Krow == (W + 2) * Cin and N % W == 0
    Cout = N // W
    num_frames = B * T
    rpf = H + 2                       # spatially padded rows per frame

    fpb, n_blocks = _row_blocking(num_frames, rpf)
    num_frames_pad = fpb * n_blocks
    rows_blk = fpb * rpf
    m_pad = num_frames_pad * rpf

    # Layout glue (plain XLA): NCHW -> channels-last frames, zero-pad H and W by
    # 1, pad the frame count to a whole number of blocks, view as 2-D rows.
    # This (~1.27x input) is the only extra HBM materialization; the 3.4x
    # im2col of the previous version now happens inside the kernel.
    x_nhwc = jnp.transpose(x, (0, 1, 3, 4, 2)).reshape(num_frames, H, W, Cin)
    x_pad = jnp.pad(x_nhwc, ((0, num_frames_pad - num_frames), (1, 1), (1, 1), (0, 0)))
    x_rows = x_pad.reshape(m_pad, Krow)

    # Explicit VMEM budget: double-buffered in/out blocks + both weight copies.
    itemsize = 4
    vmem_needed = itemsize * (2 * rows_blk * (Krow + N) + 2 * KH * Krow * N + 2 * N)
    try:
        vmem_cap = int(pltpu.get_tpu_info().vmem_capacity_bytes)
    except Exception:
        vmem_cap = 64 * 1024 * 1024
    vmem_limit = int(min(max(4 * vmem_needed, 4 << 20), max(vmem_cap // 2, 4 << 20)))

    out_flat = pl.pallas_call(
        _conv3x3_relu_kernel,
        out_shape=jax.ShapeDtypeStruct((m_pad, N), x.dtype),
        grid_spec=pltpu.PrefetchScalarGridSpec(
            num_scalar_prefetch=0,
            grid=(n_blocks,),
            in_specs=[
                pl.BlockSpec((rows_blk, Krow), lambda i: (i, 0)),
                pl.BlockSpec((KH, Krow, N), lambda i: (0, 0, 0)),
                pl.BlockSpec((1, N), lambda i: (0, 0)),
            ],
            out_specs=pl.BlockSpec((rows_blk, N), lambda i: (i, 0)),
        ),
        compiler_params=pltpu.CompilerParams(
            dimension_semantics=("parallel",),
            vmem_limit_bytes=vmem_limit),
    )(x_rows, w_taps, b_row)

    # Drop per-frame pad rows, restore [B, T, Cout, H, W] (PyTorch layout).
    out = out_flat[: num_frames * rpf].reshape(B, T, rpf, W, Cout)[:, :, :H]
    # TODO(synk): skip this transpose when the consumer accepts channels-last
    # (B, T, H, W, Cout) frames -- it re-reads/re-writes the full output.
    return jnp.transpose(out, (0, 1, 4, 2, 3))


def _reference(x, weight, bias):
    """Pure-JAX reference (per-frame conv + relu, stacked over time)."""
    B, T, Cin, H, W = x.shape
    frames = x.reshape(B * T, Cin, H, W)
    y = lax.conv_general_dilated(
        frames, weight, window_strides=(1, 1), padding="SAME",
        dimension_numbers=("NCHW", "OIHW", "NCHW"),
        precision=lax.Precision.HIGHEST)
    y = jnp.maximum(y + bias[None, :, None, None], 0.0)
    Cout = weight.shape[0]
    return y.reshape(B, T, Cout, H, W)


if __name__ == "__main__":
    key = jax.random.PRNGKey(0)
    k_x, k_w, k_b = jax.random.split(key, 3)

    B, T, Cin, H, W = 2, 3, 4, 16, 16
    Cout = 8

    x = jax.random.normal(k_x, (B, T, Cin, H, W), dtype=jnp.float32)
    # Deterministic Kaiming-like init for the synthetic inner conv model.
    fan_in = Cin * 3 * 3
    weight = jax.random.normal(k_w, (Cout, Cin, 3, 3), dtype=jnp.float32) * (2.0 / fan_in) ** 0.5
    bias = jax.random.normal(k_b, (Cout,), dtype=jnp.float32) * 0.01

    # Pack the conv weights once (cached across forward calls, not rebuilt per call).
    w_taps, b_row = prepare_timewarp_params(weight, bias, W)

    fwd = jax.jit(time_warp_forward)
    out = jax.block_until_ready(fwd(x, w_taps, b_row))

    ref = _reference(x, weight, bias)
    assert out.shape == (B, T, Cout, H, W), out.shape
    assert jnp.allclose(out, ref, atol=1e-4, rtol=1e-4), "mismatch vs reference"

    print("KERNEL_OK")
</pallas_src>

<mosaic_0001>
module attributes {stable_mosaic.version = 11 : i64} {
  func.func @_conv3x3_relu_kernel(%arg0: i32, %arg1: memref<108x72xf32, #tpu.memory_space<vmem>>, %arg2: memref<3x72x128xf32, #tpu.memory_space<vmem>>, %arg3: memref<1x128xf32, #tpu.memory_space<vmem>>, %arg4: memref<108x128xf32, #tpu.memory_space<vmem>>) attributes {dimension_semantics = [#tpu.dimension_semantics<parallel>], iteration_bounds = array<i64: 1>, scalar_prefetch = 0 : i64, scratch_operands = 0 : i64, tpu.core_type = #tpu.core_type<tc>, window_params = [{transform_indices = @transform_0, window_bounds = array<i64: 108, 72>}, {pipeline_mode = #tpu.pipeline_mode<synchronous>, transform_indices = @transform_1, window_bounds = array<i64: 3, 72, 128>}, {pipeline_mode = #tpu.pipeline_mode<synchronous>, transform_indices = @transform_2, window_bounds = array<i64: 1, 128>}, {transform_indices = @transform_3, window_bounds = array<i64: 108, 128>}]} {
    %c0 = arith.constant 0 : index
    %c0_0 = arith.constant 0 : index
    %0 = vector.load %arg1[%c0, %c0_0] : memref<108x72xf32, #tpu.memory_space<vmem>>, vector<106x72xf32>
    %c0_1 = arith.constant 0 : index
    %c0_2 = arith.constant 0 : index
    %c0_3 = arith.constant 0 : index
    %1 = vector.load %arg2[%c0_1, %c0_2, %c0_3] : memref<3x72x128xf32, #tpu.memory_space<vmem>>, vector<1x72x128xf32>
    %2 = vector.shape_cast %1 : vector<1x72x128xf32> to vector<72x128xf32>
    %cst = arith.constant dense<0.000000e+00> : vector<106x128xf32>
    %3 = tpu.matmul %0, %2, %cst {dimension_numbers = #tpu.dot_dimension_numbers<[1], [0], [0], [1], [0, 0, 1, 1], [], []>} : vector<106x72xf32>, vector<72x128xf32>, vector<106x128xf32> -> vector<106x128xf32>
    %c1 = arith.constant 1 : index
    %c0_4 = arith.constant 0 : index
    %4 = vector.load %arg1[%c1, %c0_4] : memref<108x72xf32, #tpu.memory_space<vmem>>, vector<106x72xf32>
    %c1_5 = arith.constant 1 : index
    %c0_6 = arith.constant 0 : index
    %c0_7 = arith.constant 0 : index
    %5 = vector.load %arg2[%c1_5, %c0_6, %c0_7] : memref<3x72x128xf32, #tpu.memory_space<vmem>>, vector<1x72x128xf32>
    %6 = vector.shape_cast %5 : vector<1x72x128xf32> to vector<72x128xf32>
    %cst_8 = arith.constant dense<0.000000e+00> : vector<106x128xf32>
    %7 = tpu.matmul %4, %6, %cst_8 {dimension_numbers = #tpu.dot_dimension_numbers<[1], [0], [0], [1], [0, 0, 1, 1], [], []>} : vector<106x72xf32>, vector<72x128xf32>, vector<106x128xf32> -> vector<106x128xf32>
    %8 = arith.addf %3, %7 : vector<106x128xf32>
    %c2 = arith.constant 2 : index
    %c0_9 = arith.constant 0 : index
    %9 = vector.load %arg1[%c2, %c0_9] : memref<108x72xf32, #tpu.memory_space<vmem>>, vector<106x72xf32>
    %c2_10 = arith.constant 2 : index
    %c0_11 = arith.constant 0 : index
    %c0_12 = arith.constant 0 : index
    %10 = vector.load %arg2[%c2_10, %c0_11, %c0_12] : memref<3x72x128xf32, #tpu.memory_space<vmem>>, vector<1x72x128xf32>
    %11 = vector.shape_cast %10 : vector<1x72x128xf32> to vector<72x128xf32>
    %cst_13 = arith.constant dense<0.000000e+00> : vector<106x128xf32>
    %12 = tpu.matmul %9, %11, %cst_13 {dimension_numbers = #tpu.dot_dimension_numbers<[1], [0], [0], [1], [0, 0, 1, 1], [], []>} : vector<106x72xf32>, vector<72x128xf32>, vector<106x128xf32> -> vector<106x128xf32>
    %13 = arith.addf %8, %12 : vector<106x128xf32>
    %c0_14 = arith.constant 0 : index
    %c0_15 = arith.constant 0 : index
    %14 = vector.load %arg3[%c0_14, %c0_15] : memref<1x128xf32, #tpu.memory_space<vmem>>, vector<1x128xf32>
    %15 = vector.broadcast %14 : vector<1x128xf32> to vector<106x128xf32>
    %16 = arith.addf %13, %15 : vector<106x128xf32>
    %cst_16 = arith.constant 0.000000e+00 : f32
    %17 = vector.broadcast %cst_16 : f32 to vector<106x128xf32>
    %18 = arith.maximumf %16, %17 : vector<106x128xf32>
    %c0_17 = arith.constant 0 : index
    %c0_18 = arith.constant 0 : index
    %19 = vector.load %arg4[%c0_17, %c0_18] : memref<108x128xf32, #tpu.memory_space<vmem>>, vector<106x128xf32>
    tpu.vector_store %arg4[%c0_17, %c0_18], %18 {strides = array<i32>} : memref<108x128xf32, #tpu.memory_space<vmem>>, vector<106x128xf32>,
    %cst_19 = arith.constant 0.000000e+00 : f32
    %20 = vector.broadcast %cst_19 : f32 to vector<2x128xf32>
    %c106 = arith.constant 106 : index
    %c0_20 = arith.constant 0 : index
    %21 = vector.load %arg4[%c106, %c0_20] : memref<108x128xf32, #tpu.memory_space<vmem>>, vector<2x128xf32>
    tpu.vector_store %arg4[%c106, %c0_20], %20 {strides = array<i32>} : memref<108x128xf32, #tpu.memory_space<vmem>>, vector<2x128xf32>,
    return
  }
  func.func @transform_0(%arg0: i32) -> (i32, i32) {
    %c0_i32 = arith.constant 0 : i32
    %c0_i32_0 = arith.constant 0 : i32
    return %arg0, %c0_i32 : i32, i32
  }
  func.func @transform_1(%arg0: i32) -> (i32, i32, i32) {
    %c0_i32 = arith.constant 0 : i32
    %c0_i32_0 = arith.constant 0 : i32
    %c0_i32_1 = arith.constant 0 : i32
    %c0_i32_2 = arith.constant 0 : i32
    return %c0_i32, %c0_i32_0, %c0_i32_1 : i32, i32, i32
  }
  func.func @transform_2(%arg0: i32) -> (i32, i32) {
    %c0_i32 = arith.constant 0 : i32
    %c0_i32_0 = arith.constant 0 : i32
    %c0_i32_1 = arith.constant 0 : i32
    return %c0_i32, %c0_i32_0 : i32, i32
  }
  func.func @transform_3(%arg0: i32) -> (i32, i32) {
    %c0_i32 = arith.constant 0 : i32
    %c0_i32_0 = arith.constant 0 : i32
    return %arg0, %c0_i32 : i32, i32
  }
}

</mosaic_0001>

<llo_original>
// kernel: time_warp_forward.1
$region0: #{time_warp_forward.1}
  #allocation0 [shape = 'u32[]', space=smem, size = 0x4, offset = 0x4, fixed_abs, tag = 'smem constant byte address 0x4 - core index']
  #allocation1 [shape = 'u32[72,128]{1,0:T(1,128)}', space=vmem, size = 0x9000, scoped, tag = 'internal scratch']
  %s0 = inlined_call_operand.vmem [shape: f32[108,72], index: 0, kind: input, shape index: {}]
  %s1 = inlined_call_operand.vmem [shape: f32[3,72,128], index: 1, kind: input, shape index: {}]
  %s2 = inlined_call_operand.vmem [shape: f32[1,128], index: 2, kind: input, shape index: {}]
  %s3 = inlined_call_operand.vmem [shape: f32[108,128], index: 3, kind: output, shape index: {}]
  %s4 = sld [smem:[#allocation0]]
  $region22: #{time_warp_forward.1} parent=0
    _
  %s6 = ssub.s32 1, %s4
  %s7 = scalar_select 0, %s6, %s4
  // Predicated region
  $region2: #{time_warp_forward.1} parent=0 // pred_check
    _
  $region3: #{time_warp_forward.1} parent=0 // pred_check_branch
    %9 = sbr.rel (0) target = $region5
  $region4: #{time_warp_forward.1} parent=0 // pred_region
    _
  $region5: #{time_warp_forward.1} parent=0 // pred_fallthru
    _
  // Predicated region
  $region6: #{time_warp_forward.1} parent=0 // pred_check
    _
  $region7: #{time_warp_forward.1} parent=0 // pred_check_branch
    %11 = sbr.rel (0) target = $region9
  $region8: #{time_warp_forward.1} parent=0 // pred_region
    _
  $region9: #{time_warp_forward.1} parent=0 // pred_fallthru
    _
  // Predicated region
  $region10: #{time_warp_forward.1} parent=0 // pred_check
    _
  $region11: #{time_warp_forward.1} parent=0 // pred_check_branch
    %13 = sbr.rel (0) target = $region13
  $region12: #{time_warp_forward.1} parent=0 // pred_region
    _
  $region13: #{time_warp_forward.1} parent=0 // pred_fallthru
    _
  %v14 = vld [vmem:[%s0] sm:$0xff]
  %v15 = vld [vmem:[%s0 + $0x8] sm:$0xff]
  %v16 = vld [vmem:[%s0 + $0x10] sm:$0xff]
  %v17 = vld [vmem:[%s0 + $0x18] sm:$0xff]
  %v18 = vld [vmem:[%s0 + $0x20] sm:$0xff]
  %v19 = vld [vmem:[%s0 + $0x28] sm:$0xff]
  %v20 = vld [vmem:[%s0 + $0x30] sm:$0xff]
  %v21 = vld [vmem:[%s0 + $0x38] sm:$0xff]
  %v22 = vld [vmem:[%s0 + $0x40] sm:$0xff]
  %v23 = vld [vmem:[%s0 + $0x48] sm:$0xff]
  %v24 = vld [vmem:[%s0 + $0x50] sm:$0xff]
  %v25 = vld [vmem:[%s0 + $0x58] sm:$0xff]
  %v26 = vld [vmem:[%s0 + $0x60] sm:$0xff]
  %v27 = vld [vmem:[%s0 + $0x68] sm:$0x3]
  %v28 = vld [vmem:[%s1] sm:$0xff]
  %v29 = vld [vmem:[%s1 + $0x8] sm:$0xff]
  %v30 = vld [vmem:[%s1 + $0x10] sm:$0xff]
  %v31 = vld [vmem:[%s1 + $0x18] sm:$0xff]
  %v32 = vld [vmem:[%s1 + $0x20] sm:$0xff]
  %v33 = vld [vmem:[%s1 + $0x28] sm:$0xff]
  %v34 = vld [vmem:[%s1 + $0x30] sm:$0xff]
  %v35 = vld [vmem:[%s1 + $0x38] sm:$0xff]
  %v36 = vld [vmem:[%s1 + $0x40] sm:$0xff]
  %v37 = vld [vmem:[%s0 + $0x1] sm:$0xff]
  %v38 = vld [vmem:[%s0 + $0x9] sm:$0xff]
  %v39 = vld [vmem:[%s0 + $0x11] sm:$0xff]
  %v40 = vld [vmem:[%s0 + $0x19] sm:$0xff]
  %v41 = vld [vmem:[%s0 + $0x21] sm:$0xff]
  %v42 = vld [vmem:[%s0 + $0x29] sm:$0xff]
  %v43 = vld [vmem:[%s0 + $0x31] sm:$0xff]
  %v44 = vld [vmem:[%s0 + $0x39] sm:$0xff]
  %v45 = vld [vmem:[%s0 + $0x41] sm:$0xff]
  %v46 = vld [vmem:[%s0 + $0x49] sm:$0xff]
  %v47 = vld [vmem:[%s0 + $0x51] sm:$0xff]
  %v48 = vld [vmem:[%s0 + $0x59] sm:$0xff]
  %v49 = vld [vmem:[%s0 + $0x61] sm:$0xff]
  %v50 = vld [vmem:[%s0 + $0x69] sm:$0x3]
  %s51 = scalar_lea.vmem %s1, 72
  %v52 = vld [vmem:[%s51] sm:$0xff]
  %v53 = vld [vmem:[%s51 + $0x8] sm:$0xff]
  %v54 = vld [vmem:[%s51 + $0x10] sm:$0xff]
  %v55 = vld [vmem:[%s51 + $0x18] sm:$0xff]
  %v56 = vld [vmem:[%s51 + $0x20] sm:$0xff]
  %v57 = vld [vmem:[%s51 + $0x28] sm:$0xff]
  %v58 = vld [vmem:[%s51 + $0x30] sm:$0xff]
  %v59 = vld [vmem:[%s51 + $0x38] sm:$0xff]
  %v60 = vld [vmem:[%s51 + $0x40] sm:$0xff]
  %vm61 = vcmask 588800
  %v63 = vsel %vm61, %v37, 0
  %v66 = vsel %vm61, %v38, 0
  %v69 = vsel %vm61, %v39, 0
  %v72 = vsel %vm61, %v40, 0
  %v75 = vsel %vm61, %v41, 0
  %v78 = vsel %vm61, %v42, 0
  %v81 = vsel %vm61, %v43, 0
  %v84 = vsel %vm61, %v44, 0
  %v87 = vsel %vm61, %v45, 0
  %v90 = vsel %vm61, %v46, 0
  %v93 = vsel %vm61, %v47, 0
  %v96 = vsel %vm61, %v48, 0
  %v99 = vsel %vm61, %v49, 0
  %v102 = vsel %vm61, %v50, 0
  %104 = vmatpush.msra.mxu0 0.0
  %105 = vmatpush.msra.mxu0 0.0
  %106 = vmatpush.msra.mxu0 0.0
  %107 = vmatpush.msra.mxu0 0.0
  %108 = vmatpush.msra.mxu0 0.0
  %109 = vmatpush.msra.mxu0 0.0
  %110 = vmatpush.msra.mxu0 0.0
  %111 = vmatpush.msra.mxu0 %v60
  %112 = vmatpush.msra.mxu0 %v59
  %113 = vmatpush.msra.mxu0 %v58
  %114 = vmatpush.msra.mxu0 %v57
  %115 = vmatpush.msra.mxu0 %v56
  %116 = vmatpush.msra.mxu0 %v55
  %117 = vmatpush.msra.mxu0 %v54
  %118 = vmatpush.msra.mxu0 %v53
  %119 = vmatpush.msra.mxu0 %v52
  %120 = vmatmul.f32.gmra.mxu0 %v63
  %v121 = vpop.f32.mrf.mxu0
  %v122 = vadd.f32 0.0, %v121
  %123 = vmatmul.f32.gmra.mxu0 %v66
  %v124 = vpop.f32.mrf.mxu0
  %v125 = vadd.f32 0.0, %v124
  %126 = vmatmul.f32.gmra.mxu0 %v69
  %v127 = vpop.f32.mrf.mxu0
  %v128 = vadd.f32 0.0, %v127
  %129 = vmatmul.f32.gmra.mxu0 %v72
  %v130 = vpop.f32.mrf.mxu0
  %v131 = vadd.f32 0.0, %v130
  %132 = vmatmul.f32.gmra.mxu0 %v75
  %v133 = vpop.f32.mrf.mxu0
  %v134 = vadd.f32 0.0, %v133
  %135 = vmatmul.f32.gmra.mxu0 %v78
  %v136 = vpop.f32.mrf.mxu0
  %v137 = vadd.f32 0.0, %v136
  %138 = vmatmul.f32.gmra.mxu0 %v81
  %v139 = vpop.f32.mrf.mxu0
  %v140 = vadd.f32 0.0, %v139
  %141 = vmatmul.f32.gmra.mxu0 %v84
  %v142 = vpop.f32.mrf.mxu0
  %v143 = vadd.f32 0.0, %v142
  %144 = vmatmul.f32.gmra.mxu0 %v87
  %v145 = vpop.f32.mrf.mxu0
  %v146 = vadd.f32 0.0, %v145
  %147 = vmatmul.f32.gmra.mxu0 %v90
  %v148 = vpop.f32.mrf.mxu0
  %v149 = vadd.f32 0.0, %v148
  %150 = vmatmul.f32.gmra.mxu0 %v93
  %v151 = vpop.f32.mrf.mxu0
  %v152 = vadd.f32 0.0, %v151
  %153 = vmatmul.f32.gmra.mxu0 %v96
  %v154 = vpop.f32.mrf.mxu0
  %v155 = vadd.f32 0.0, %v154
  %156 = vmatmul.f32.gmra.mxu0 %v99
  %v157 = vpop.f32.mrf.mxu0
  %v158 = vadd.f32 0.0, %v157
  %159 = vmatmul.f32.gmra.mxu0 %v102
  %v160 = vpop.f32.mrf.mxu0
  %v161 = vadd.f32 0.0, %v160
  %162 = vdwg.mxu0
  %v164 = vsel %vm61, %v14, 0
  %v167 = vsel %vm61, %v15, 0
  %v170 = vsel %vm61, %v16, 0
  %v173 = vsel %vm61, %v17, 0
  %v176 = vsel %vm61, %v18, 0
  %v179 = vsel %vm61, %v19, 0
  %v182 = vsel %vm61, %v20, 0
  %v185 = vsel %vm61, %v21, 0
  %v188 = vsel %vm61, %v22, 0
  %v191 = vsel %vm61, %v23, 0
  %v194 = vsel %vm61, %v24, 0
  %v197 = vsel %vm61, %v25, 0
  %v200 = vsel %vm61, %v26, 0
  %v203 = vsel %vm61, %v27, 0
  %205 = vmatpush.msra.mxu0 0.0
  %206 = vmatpush.msra.mxu0 0.0
  %207 = vmatpush.msra.mxu0 0.0
  %208 = vmatpush.msra.mxu0 0.0
  %209 = vmatpush.msra.mxu0 0.0
  %210 = vmatpush.msra.mxu0 0.0
  %211 = vmatpush.msra.mxu0 0.0
  %212 = vmatpush.msra.mxu0 %v36
  %213 = vmatpush.msra.mxu0 %v35
  %214 = vmatpush.msra.mxu0 %v34
  %215 = vmatpush.msra.mxu0 %v33
  %216 = vmatpush.msra.mxu0 %v32
  %217 = vmatpush.msra.mxu0 %v31
  %218 = vmatpush.msra.mxu0 %v30
  %219 = vmatpush.msra.mxu0 %v29
  %220 = vmatpush.msra.mxu0 %v28
  %221 = vmatmul.f32.gmra.mxu0 %v164
  %v222 = vpop.f32.mrf.mxu0
  %v223 = vadd.f32 %v122, %v222
  %224 = vmatmul.f32.gmra.mxu0 %v167
  %v225 = vpop.f32.mrf.mxu0
  %v226 = vadd.f32 %v125, %v225
  %227 = vmatmul.f32.gmra.mxu0 %v170
  %v228 = vpop.f32.mrf.mxu0
  %v229 = vadd.f32 %v128, %v228
  %230 = vmatmul.f32.gmra.mxu0 %v173
  %v231 = vpop.f32.mrf.mxu0
  %v232 = vadd.f32 %v131, %v231
  %233 = vmatmul.f32.gmra.mxu0 %v176
  %v234 = vpop.f32.mrf.mxu0
  %v235 = vadd.f32 %v134, %v234
  %236 = vmatmul.f32.gmra.mxu0 %v179
  %v237 = vpop.f32.mrf.mxu0
  %v238 = vadd.f32 %v137, %v237
  %239 = vmatmul.f32.gmra.mxu0 %v182
  %v240 = vpop.f32.mrf.mxu0
  %v241 = vadd.f32 %v140, %v240
  %242 = vmatmul.f32.gmra.mxu0 %v185
  %v243 = vpop.f32.mrf.mxu0
  %v244 = vadd.f32 %v143, %v243
  %245 = vmatmul.f32.gmra.mxu0 %v188
  %v246 = vpop.f32.mrf.mxu0
  %v247 = vadd.f32 %v146, %v246
  %248 = vmatmul.f32.gmra.mxu0 %v191
  %v249 = vpop.f32.mrf.mxu0
  %v250 = vadd.f32 %v149, %v249
  %251 = vmatmul.f32.gmra.mxu0 %v194
  %v252 = vpop.f32.mrf.mxu0
  %v253 = vadd.f32 %v152, %v252
  %254 = vmatmul.f32.gmra.mxu0 %v197
  %v255 = vpop.f32.mrf.mxu0
  %v256 = vadd.f32 %v155, %v255
  %257 = vmatmul.f32.gmra.mxu0 %v200
  %v258 = vpop.f32.mrf.mxu0
  %v259 = vadd.f32 %v158, %v258
  %260 = vmatmul.f32.gmra.mxu0 %v203
  %v261 = vpop.f32.mrf.mxu0
  %v262 = vadd.f32 %v161, %v261
  %263 = vdwg.mxu0
  %v264 = vld [vmem:[%s0 + $0x2] sm:$0xff]
  %v265 = vld [vmem:[%s0 + $0xa] sm:$0xff]
  %v266 = vld [vmem:[%s0 + $0x12] sm:$0xff]
  %v267 = vld [vmem:[%s0 + $0x1a] sm:$0xff]
  %v268 = vld [vmem:[%s0 + $0x22] sm:$0xff]
  %v269 = vld [vmem:[%s0 + $0x2a] sm:$0xff]
  %v270 = vld [vmem:[%s0 + $0x32] sm:$0xff]
  %v271 = vld [vmem:[%s0 + $0x3a] sm:$0xff]
  %v272 = vld [vmem:[%s0 + $0x42] sm:$0xff]
  %v273 = vld [vmem:[%s0 + $0x4a] sm:$0xff]
  %v274 = vld [vmem:[%s0 + $0x52] sm:$0xff]
  %v275 = vld [vmem:[%s0 + $0x5a] sm:$0xff]
  %v276 = vld [vmem:[%s0 + $0x62] sm:$0xff]
  %v277 = vld [vmem:[%s0 + $0x6a] sm:$0x3]
  %s278 = scalar_lea.vmem %s1, 144
  %v279 = vld [vmem:[%s278] sm:$0xff]
  %v280 = vld [vmem:[%s278 + $0x8] sm:$0xff]
  %v281 = vld [vmem:[%s278 + $0x10] sm:$0xff]
  %v282 = vld [vmem:[%s278 + $0x18] sm:$0xff]
  %v283 = vld [vmem:[%s278 + $0x20] sm:$0xff]
  %v284 = vld [vmem:[%s278 + $0x28] sm:$0xff]
  %v285 = vld [vmem:[%s278 + $0x30] sm:$0xff]
  %v286 = vld [vmem:[%s278 + $0x38] sm:$0xff]
  %v287 = vld [vmem:[%s278 + $0x40] sm:$0xff]
  %v289 = vsel %vm61, %v264, 0
  %v292 = vsel %vm61, %v265, 0
  %v295 = vsel %vm61, %v266, 0
  %v298 = vsel %vm61, %v267, 0
  %v301 = vsel %vm61, %v268, 0
  %v304 = vsel %vm61, %v269, 0
  %v307 = vsel %vm61, %v270, 0
  %v310 = vsel %vm61, %v271, 0
  %v313 = vsel %vm61, %v272, 0
  %v316 = vsel %vm61, %v273, 0
  %v319 = vsel %vm61, %v274, 0
  %v322 = vsel %vm61, %v275, 0
  %v325 = vsel %vm61, %v276, 0
  %v328 = vsel %vm61, %v277, 0
  %330 = vmatpush.msra.mxu0 0.0
  %331 = vmatpush.msra.mxu0 0.0
  %332 = vmatpush.msra.mxu0 0.0
  %333 = vmatpush.msra.mxu0 0.0
  %334 = vmatpush.msra.mxu0 0.0
  %335 = vmatpush.msra.mxu0 0.0
  %336 = vmatpush.msra.mxu0 0.0
  %337 = vmatpush.msra.mxu0 %v287
  %338 = vmatpush.msra.mxu0 %v286
  %339 = vmatpush.msra.mxu0 %v285
  %340 = vmatpush.msra.mxu0 %v284
  %341 = vmatpush.msra.mxu0 %v283
  %342 = vmatpush.msra.mxu0 %v282
  %343 = vmatpush.msra.mxu0 %v281
  %344 = vmatpush.msra.mxu0 %v280
  %345 = vmatpush.msra.mxu0 %v279
  %346 = vmatmul.f32.gmra.mxu0 %v289
  %v347 = vpop.f32.mrf.mxu0
  %v348 = vadd.f32 0.0, %v347
  %349 = vmatmul.f32.gmra.mxu0 %v292
  %v350 = vpop.f32.mrf.mxu0
  %v351 = vadd.f32 0.0, %v350
  %352 = vmatmul.f32.gmra.mxu0 %v295
  %v353 = vpop.f32.mrf.mxu0
  %v354 = vadd.f32 0.0, %v353
  %355 = vmatmul.f32.gmra.mxu0 %v298
  %v356 = vpop.f32.mrf.mxu0
  %v357 = vadd.f32 0.0, %v356
  %358 = vmatmul.f32.gmra.mxu0 %v301
  %v359 = vpop.f32.mrf.mxu0
  %v360 = vadd.f32 0.0, %v359
  %361 = vmatmul.f32.gmra.mxu0 %v304
  %v362 = vpop.f32.mrf.mxu0
  %v363 = vadd.f32 0.0, %v362
  %364 = vmatmul.f32.gmra.mxu0 %v307
  %v365 = vpop.f32.mrf.mxu0
  %v366 = vadd.f32 0.0, %v365
  %367 = vmatmul.f32.gmra.mxu0 %v310
  %v368 = vpop.f32.mrf.mxu0
  %v369 = vadd.f32 0.0, %v368
  %370 = vmatmul.f32.gmra.mxu0 %v313
  %v371 = vpop.f32.mrf.mxu0
  %v372 = vadd.f32 0.0, %v371
  %373 = vmatmul.f32.gmra.mxu0 %v316
  %v374 = vpop.f32.mrf.mxu0
  %v375 = vadd.f32 0.0, %v374
  %376 = vmatmul.f32.gmra.mxu0 %v319
  %v377 = vpop.f32.mrf.mxu0
  %v378 = vadd.f32 0.0, %v377
  %379 = vmatmul.f32.gmra.mxu0 %v322
  %v380 = vpop.f32.mrf.mxu0
  %v381 = vadd.f32 0.0, %v380
  %382 = vmatmul.f32.gmra.mxu0 %v325
  %v383 = vpop.f32.mrf.mxu0
  %v384 = vadd.f32 0.0, %v383
  %385 = vmatmul.f32.gmra.mxu0 %v328
  %v386 = vpop.f32.mrf.mxu0
  %v387 = vadd.f32 0.0, %v386
  %388 = vdwg.mxu0
  %v389 = vadd.f32 %v223, %v348
  %v390 = vadd.f32 %v226, %v351
  %v391 = vadd.f32 %v229, %v354
  %v392 = vadd.f32 %v232, %v357
  %v393 = vadd.f32 %v235, %v360
  %v394 = vadd.f32 %v238, %v363
  %v395 = vadd.f32 %v241, %v366
  %v396 = vadd.f32 %v244, %v369
  %v397 = vadd.f32 %v247, %v372
  %v398 = vadd.f32 %v250, %v375
  %v399 = vadd.f32 %v253, %v378
  %v400 = vadd.f32 %v256, %v381
  %v401 = vadd.f32 %v259, %v384
  %v402 = vadd.f32 %v262, %v387
  %v403 = vld [vmem:[%s2] sm:$0x1]
  %v405 = vperm.slane %v403, 0
  %v407 = vadd.f32 %v389, %v405
  %v408 = vadd.f32 %v390, %v405
  %v409 = vadd.f32 %v391, %v405
  %v410 = vadd.f32 %v392, %v405
  %v411 = vadd.f32 %v393, %v405
  %v412 = vadd.f32 %v394, %v405
  %v413 = vadd.f32 %v395, %v405
  %v414 = vadd.f32 %v396, %v405
  %v415 = vadd.f32 %v397, %v405
  %v416 = vadd.f32 %v398, %v405
  %v417 = vadd.f32 %v399, %v405
  %v418 = vadd.f32 %v400, %v405
  %v419 = vadd.f32 %v401, %v405
  %v420 = vadd.f32 %v402, %v405
  %v421 = vmax.f32 %v407, 0.0
  %v422 = vmax.f32 %v408, 0.0
  %v423 = vmax.f32 %v409, 0.0
  %v424 = vmax.f32 %v410, 0.0
  %v425 = vmax.f32 %v411, 0.0
  %v426 = vmax.f32 %v412, 0.0
  %v427 = vmax.f32 %v413, 0.0
  %v428 = vmax.f32 %v414, 0.0
  %v429 = vmax.f32 %v415, 0.0
  %v430 = vmax.f32 %v416, 0.0
  %v431 = vmax.f32 %v417, 0.0
  %v432 = vmax.f32 %v418, 0.0
  %v433 = vmax.f32 %v419, 0.0
  %v434 = vmax.f32 %v420, 0.0
  %435 = vst [vmem:[%s3] sm:$0xff] %v421
  %436 = vst [vmem:[%s3 + $0x8] sm:$0xff] %v422
  %437 = vst [vmem:[%s3 + $0x10] sm:$0xff] %v423
  %438 = vst [vmem:[%s3 + $0x18] sm:$0xff] %v424
  %439 = vst [vmem:[%s3 + $0x20] sm:$0xff] %v425
  %440 = vst [vmem:[%s3 + $0x28] sm:$0xff] %v426
  %441 = vst [vmem:[%s3 + $0x30] sm:$0xff] %v427
  %442 = vst [vmem:[%s3 + $0x38] sm:$0xff] %v428
  %443 = vst [vmem:[%s3 + $0x40] sm:$0xff] %v429
  %444 = vst [vmem:[%s3 + $0x48] sm:$0xff] %v430
  %445 = vst [vmem:[%s3 + $0x50] sm:$0xff] %v431
  %446 = vst [vmem:[%s3 + $0x58] sm:$0xff] %v432
  %447 = vst [vmem:[%s3 + $0x60] sm:$0xff] %v433
  %448 = vst [vmem:[%s3 + $0x68] sm:$0x3] %v434
  %449 = vst [vmem:[%s3 + $0x6a] sm:$0x3] 0.0
  // Predicated region
  $region14: #{time_warp_forward.1} parent=0 // pred_check
    _
  $region15: #{time_warp_forward.1} parent=0 // pred_check_branch
    %451 = sbr.rel (0) target = $region17
  $region16: #{time_warp_forward.1} parent=0 // pred_region
    _
  $region17: #{time_warp_forward.1} parent=0 // pred_fallthru
    _
  // Predicated region
  $region18: #{time_warp_forward.1} parent=0 // pred_check
    _
  $region19: #{time_warp_forward.1} parent=0 // pred_check_branch
    %453 = sbr.rel (0) target = $region21
  $region20: #{time_warp_forward.1} parent=0 // pred_region
    _
  $region21: #{time_warp_forward.1} parent=0 // pred_fallthru
    _

</llo_original>
